<compile_context>
chip_gen: v5e
topology: v5e:2x2
jax: 0.10.0
libtpu: 0.0.40
codegen_flags: <defaults>
</compile_context>

<pallas_src>
import jax
import jax.numpy as jnp
from jax.experimental import pallas as pl
from jax.experimental.pallas import tpu as pltpu


# ------------------------------ fused RCBAM kernel ------------------------------
def _rcbam_kernel(x_ref, pre_ref, prepool_ref, w1a_ref, w2big_ref, convmat_ref,
                  bn_ref, out0_ref, att_ref, out2_ref):
    xv = x_ref[0]                                              # (C, HW)

    # ------------------------------ ChannelGate ------------------------------
    # avg / max pool over spatial (lane reduce) -> (C, 1) columns, kept as values
    mean_col = jnp.mean(xv, axis=1, keepdims=True)             # (C, 1)
    max_col = jnp.max(xv, axis=1, keepdims=True)               # (C, 1)
    pools = jnp.concatenate([mean_col, max_col], axis=1)       # (C, 2)
    pools_aug = jnp.concatenate(                               # ones row folds b1
        [pools, jnp.ones((1, 2), jnp.float32)], axis=0)        # (C+1, 2)

    # shared MLP hidden layer for both pooled vectors in one matmul (b1 folded)
    h1 = jnp.maximum(
        jnp.dot(w1a_ref[...], pools_aug, preferred_element_type=jnp.float32),
        0.0)                                                   # (Cr, 2)
    h1sum = jnp.sum(h1, axis=1, keepdims=True)                 # (Cr, 1)

    # second MLP layer + 2*b2 + att_fc(pre_channel_att) in one matmul:
    #   w2big = [w2 | 2*b2 | wfc],  big_v = [h1sum ; 1 ; pre]
    big_v = jnp.concatenate(
        [h1sum, jnp.ones((1, 1), jnp.float32), pre_ref[0]], axis=0)   # (Cr+1+Cin, 1)
    att = jnp.dot(w2big_ref[...], big_v,
                  preferred_element_type=jnp.float32)          # (C, 1)

    att_ref[0] = att                                           # channel attention sum
    y = xv * jax.nn.sigmoid(att)                               # (C, HW) gated features

    # ------------------------------ SpatialGate ------------------------------
    cmax = jnp.max(y, axis=0, keepdims=True)                   # (1, HW) ChannelPool max
    cmean = jnp.mean(y, axis=0, keepdims=True)                 # (1, HW) ChannelPool mean
    cm = jnp.concatenate([cmax, cmean], axis=1)                # (1, 2*HW)

    # 7x7, 2->1 channel conv (bias=False, pad=3) as ONE dense MXU matmul
    conv = jnp.dot(cm, convmat_ref[...],
                   preferred_element_type=jnp.float32)         # (1, HW)

    xo = conv * bn_ref[0] + bn_ref[1]                          # folded BatchNorm2d (no ReLU)
    xo = xo + prepool_ref[0]                                   # + MaxPool2d(2,2)(pre_spatial_att)
    out2_ref[0] = xo                                           # (1, HW) lane-dense store

    out0_ref[0] = y * jax.nn.sigmoid(xo)                       # (C, HW) * (1, HW)


# ------------------------------- wrapper (glue) ---------------------------------
def rcbam_forward(x, pre_channel_att, pre_spatial_att, params):
    B, C, H, W = x.shape
    Cin = pre_channel_att.shape[1]
    HW = H * W
    Cr = params["w1"].shape[0]

    # free reshapes into the kernel layout (no transposes)
    x2 = x.reshape(B, C, HW)
    pre_ch = pre_channel_att.reshape(B, Cin, 1)

    # MaxPool2d(2,2) of the previous spatial attention -> (B, 1, HW) (lane-dense)
    p = pre_spatial_att[:, 0]
    prepool = jnp.maximum(jnp.maximum(p[:, 0::2, 0::2], p[:, 0::2, 1::2]),
                          jnp.maximum(p[:, 1::2, 0::2], p[:, 1::2, 1::2]))
    prepool = prepool.reshape(B, 1, HW)

    # bias-folded MLP weights: h = relu([w1|b1] @ [pools;1]); att = [w2|2b2|wfc] @ [h;1;pre]
    w1a = jnp.concatenate([params["w1"], params["b1"][:, None]], axis=1)       # (Cr, C+1)
    w2big = jnp.concatenate([params["w2"], 2.0 * params["b2"][:, None],
                             params["wfc"]], axis=1)                           # (C, Cr+1+Cin)

    # dense conv-as-matmul weights: convmat[c*HW+hi*W+wi, ho*W+wo] =
    #   conv_w[0, c, hi-ho+3, wi-wo+3]   (zero outside the 7x7 window / image)
    cw = params["conv_w"][0].astype(jnp.float32)                               # (2, 7, 7)
    hi = jnp.arange(H)[:, None, None, None]
    wi = jnp.arange(W)[None, :, None, None]
    ho = jnp.arange(H)[None, None, :, None]
    wo = jnp.arange(W)[None, None, None, :]
    ky = hi - ho + 3
    kx = wi - wo + 3
    valid = ((ky >= 0) & (ky < 7) & (kx >= 0) & (kx < 7)).astype(jnp.float32)  # (H,W,H,W)
    kyc = jnp.clip(ky, 0, 6)
    kxc = jnp.clip(kx, 0, 6)
    convmat = (cw[:, kyc, kxc] * valid[None]).reshape(2 * HW, HW)              # (2*HW, HW)

    # folded BatchNorm2d (inference form)
    eps = 1e-5
    bn_scale = params["bn_gamma"] / jnp.sqrt(params["bn_var"] + eps)
    bn_shift = params["bn_beta"] - params["bn_mean"] * bn_scale
    bn = jnp.stack([bn_scale, bn_shift]).astype(jnp.float32)                   # (2,)

    ce = pl.CostEstimate(
        flops=int(B * (2 * 2 * HW * HW + 2 * Cr * (C + 1) * 2
                       + 2 * C * (Cr + 1 + Cin) + 10 * C * HW)),
        transcendentals=int(B * (C + HW)),
        bytes_accessed=int(4 * (2 * B * C * HW + B * Cin + 2 * B * HW + B * C
                                + Cr * (C + 1) + C * (Cr + 1 + Cin)
                                + 2 * HW * HW + 2)),
    )

    out0f, att_col, out2 = pl.pallas_call(
        _rcbam_kernel,
        grid=(B,),
        in_specs=[
            pl.BlockSpec((1, C, HW), lambda i: (i, 0, 0)),
            pl.BlockSpec((1, Cin, 1), lambda i: (i, 0, 0)),
            pl.BlockSpec((1, 1, HW), lambda i: (i, 0, 0)),
            pl.BlockSpec((Cr, C + 1), lambda i: (0, 0)),
            pl.BlockSpec((C, Cr + 1 + Cin), lambda i: (0, 0)),
            pl.BlockSpec((2 * HW, HW), lambda i: (0, 0)),
            pl.BlockSpec(memory_space=pltpu.MemorySpace.SMEM),
        ],
        out_specs=(
            pl.BlockSpec((1, C, HW), lambda i: (i, 0, 0)),
            pl.BlockSpec((1, C, 1), lambda i: (i, 0, 0)),
            pl.BlockSpec((1, 1, HW), lambda i: (i, 0, 0)),
        ),
        out_shape=(
            jax.ShapeDtypeStruct((B, C, HW), jnp.float32),
            jax.ShapeDtypeStruct((B, C, 1), jnp.float32),
            jax.ShapeDtypeStruct((B, 1, HW), jnp.float32),
        ),
        compiler_params=pltpu.CompilerParams(dimension_semantics=("parallel",)),
        cost_estimate=ce,
    )(x2, pre_ch, prepool, w1a, w2big, convmat, bn)

    out0 = out0f.reshape(B, C, H, W)
    channel_att = att_col.reshape(B, C)
    spatial_att = out2.reshape(B, 1, H, W)
    # RCBAM returns {0: gated feature map, 1: channel att sum, 2: spatial att map}
    return out0, channel_att, spatial_att


# ------------------------------ pure-JAX reference -------------------------------
def rcbam_reference(x, pre_channel_att, pre_spatial_att, params):
    eps = 1e-5
    avg = jnp.mean(x, axis=(2, 3))
    mx = jnp.max(x, axis=(2, 3))

    def mlp(v):
        h = jnp.maximum(v @ params["w1"].T + params["b1"], 0.0)
        return h @ params["w2"].T + params["b2"]

    att = mlp(avg) + mlp(mx) + pre_channel_att @ params["wfc"].T
    y = x * jax.nn.sigmoid(att)[:, :, None, None]

    cmax = jnp.max(y, axis=1, keepdims=True)
    cmean = jnp.mean(y, axis=1, keepdims=True)
    xc = jnp.concatenate([cmax, cmean], axis=1)
    conv = jax.lax.conv_general_dilated(
        xc, params["conv_w"], window_strides=(1, 1), padding=((3, 3), (3, 3)),
        dimension_numbers=("NCHW", "OIHW", "NCHW"))
    bn_scale = params["bn_gamma"] / jnp.sqrt(params["bn_var"] + eps)
    bn_shift = params["bn_beta"] - params["bn_mean"] * bn_scale
    xo = conv * bn_scale + bn_shift
    p = pre_spatial_att[:, 0]
    pool = jnp.maximum(jnp.maximum(p[:, 0::2, 0::2], p[:, 0::2, 1::2]),
                       jnp.maximum(p[:, 1::2, 0::2], p[:, 1::2, 1::2]))
    xo = xo + pool[:, None, :, :]
    out0 = y * jax.nn.sigmoid(xo)
    return out0, att, xo


if __name__ == "__main__":
    # small shapes: in_channel=8, gate_channels=16, reduction_ratio=4, H=W=8
    B, Cin, C, H, W = 2, 8, 16, 8, 8
    r = 4
    Cr = C // r

    key = jax.random.PRNGKey(0)
    ks = jax.random.split(key, 9)
    x0 = jax.random.normal(ks[0], (B, C, H, W), jnp.float32)                 # x[0]
    pre_channel_att = jax.random.normal(ks[1], (B, Cin), jnp.float32)        # x[1]
    pre_spatial_att = jax.random.normal(ks[2], (B, 1, 2 * H, 2 * W), jnp.float32)  # x[2]

    params = dict(
        w1=0.2 * jax.random.normal(ks[3], (Cr, C), jnp.float32),   # fc1.weight (out,in)
        b1=0.1 * jax.random.normal(ks[4], (Cr,), jnp.float32),
        w2=0.2 * jax.random.normal(ks[5], (C, Cr), jnp.float32),   # fc2.weight (out,in)
        b2=0.1 * jax.random.normal(ks[6], (C,), jnp.float32),
        wfc=0.2 * jax.random.normal(ks[7], (C, Cin), jnp.float32), # att_fc.weight (no bias)
        conv_w=0.1 * jax.random.normal(ks[8], (1, 2, 7, 7), jnp.float32),  # spatial 7x7 conv
        bn_gamma=jnp.float32(1.3),
        bn_beta=jnp.float32(0.1),
        bn_mean=jnp.float32(0.05),
        bn_var=jnp.float32(0.9),
    )

    out0, ch_att, sp_att = jax.jit(rcbam_forward)(x0, pre_channel_att, pre_spatial_att, params)
    jax.block_until_ready((out0, ch_att, sp_att))

    r0, r1, r2 = rcbam_reference(x0, pre_channel_att, pre_spatial_att, params)
    assert out0.shape == (B, C, H, W)
    assert ch_att.shape == (B, C)
    assert sp_att.shape == (B, 1, H, W)
    assert jnp.allclose(out0, r0, atol=1e-4, rtol=1e-4)
    assert jnp.allclose(ch_att, r1, atol=1e-4, rtol=1e-4)
    assert jnp.allclose(sp_att, r2, atol=1e-4, rtol=1e-4)
    print("KERNEL_OK")
</pallas_src>

<mosaic_0001>
module attributes {stable_mosaic.version = 11 : i64} {
  func.func @_rcbam_kernel(%arg0: i32, %arg1: memref<1x16x64xf32, #tpu.memory_space<vmem>>, %arg2: memref<1x8x1xf32, #tpu.memory_space<vmem>>, %arg3: memref<1x1x64xf32, #tpu.memory_space<vmem>>, %arg4: memref<4x17xf32, #tpu.memory_space<vmem>>, %arg5: memref<16x13xf32, #tpu.memory_space<vmem>>, %arg6: memref<128x64xf32, #tpu.memory_space<vmem>>, %arg7: memref<2xf32, #tpu.memory_space<smem>>, %arg8: memref<1x16x64xf32, #tpu.memory_space<vmem>>, %arg9: memref<1x16x1xf32, #tpu.memory_space<vmem>>, %arg10: memref<1x1x64xf32, #tpu.memory_space<vmem>>) attributes {dimension_semantics = [#tpu.dimension_semantics<parallel>], iteration_bounds = array<i64: 2>, scalar_prefetch = 0 : i64, scratch_operands = 0 : i64, tpu.core_type = #tpu.core_type<tc>, window_params = [{transform_indices = @transform_0, window_bounds = array<i64: 1, 16, 64>}, {transform_indices = @transform_1, window_bounds = array<i64: 1, 8, 1>}, {transform_indices = @transform_2, window_bounds = array<i64: 1, 1, 64>}, {pipeline_mode = #tpu.pipeline_mode<synchronous>, transform_indices = @transform_3, window_bounds = array<i64: 4, 17>}, {pipeline_mode = #tpu.pipeline_mode<synchronous>, transform_indices = @transform_4, window_bounds = array<i64: 16, 13>}, {pipeline_mode = #tpu.pipeline_mode<synchronous>, transform_indices = @transform_5, window_bounds = array<i64: 128, 64>}, {transform_indices = @transform_6, window_bounds = array<i64: 2>}, {transform_indices = @transform_7, window_bounds = array<i64: 1, 16, 64>}, {transform_indices = @transform_8, window_bounds = array<i64: 1, 16, 1>}, {transform_indices = @transform_9, window_bounds = array<i64: 1, 1, 64>}]} {
    %c0 = arith.constant 0 : index
    %c0_0 = arith.constant 0 : index
    %c0_1 = arith.constant 0 : index
    %0 = vector.load %arg1[%c0, %c0_0, %c0_1] : memref<1x16x64xf32, #tpu.memory_space<vmem>>, vector<1x16x64xf32>
    %1 = vector.shape_cast %0 : vector<1x16x64xf32> to vector<16x64xf32>
    %cst = arith.constant dense<0.000000e+00> : vector<16xf32>
    %2 = vector.multi_reduction <add>, %1, %cst [1] : vector<16x64xf32> to vector<16xf32>
    %3 = vector.shape_cast %2 : vector<16xf32> to vector<16x1xf32>
    %cst_2 = arith.constant 6.400000e+01 : f32
    %4 = vector.broadcast %cst_2 : f32 to vector<16x1xf32>
    %5 = arith.divf %3, %4 : vector<16x1xf32>
    %cst_3 = arith.constant dense<0xFF800000> : vector<16xf32>
    %6 = vector.multi_reduction <maximumf>, %1, %cst_3 [1] : vector<16x64xf32> to vector<16xf32>
    %7 = vector.shape_cast %6 : vector<16xf32> to vector<16x1xf32>
    %8 = tpu.concatenate %5, %7 in 1 : vector<16x1xf32>, vector<16x1xf32> -> vector<16x2xf32>
    %cst_4 = arith.constant 1.000000e+00 : f32
    %9 = vector.broadcast %cst_4 : f32 to vector<1x2xf32>
    %10 = tpu.concatenate %8, %9 in 0 : vector<16x2xf32>, vector<1x2xf32> -> vector<17x2xf32>
    %c0_5 = arith.constant 0 : index
    %c0_6 = arith.constant 0 : index
    %11 = vector.load %arg4[%c0_5, %c0_6] : memref<4x17xf32, #tpu.memory_space<vmem>>, vector<4x17xf32>
    %cst_7 = arith.constant dense<0.000000e+00> : vector<4x2xf32>
    %12 = tpu.matmul %11, %10, %cst_7 {dimension_numbers = #tpu.dot_dimension_numbers<[1], [0], [0], [1], [0, 0, 1, 1], [], []>} : vector<4x17xf32>, vector<17x2xf32>, vector<4x2xf32> -> vector<4x2xf32>
    %cst_8 = arith.constant 0.000000e+00 : f32
    %13 = vector.broadcast %cst_8 : f32 to vector<4x2xf32>
    %14 = arith.maximumf %12, %13 : vector<4x2xf32>
    %cst_9 = arith.constant dense<0.000000e+00> : vector<4xf32>
    %15 = vector.multi_reduction <add>, %14, %cst_9 [1] : vector<4x2xf32> to vector<4xf32>
    %16 = vector.shape_cast %15 : vector<4xf32> to vector<4x1xf32>
    %cst_10 = arith.constant 1.000000e+00 : f32
    %17 = vector.broadcast %cst_10 : f32 to vector<1x1xf32>
    %c0_11 = arith.constant 0 : index
    %c0_12 = arith.constant 0 : index
    %c0_13 = arith.constant 0 : index
    %18 = vector.load %arg2[%c0_11, %c0_12, %c0_13] : memref<1x8x1xf32, #tpu.memory_space<vmem>>, vector<1x8x1xf32>
    %19 = vector.shape_cast %18 : vector<1x8x1xf32> to vector<8x1xf32>
    %20 = tpu.concatenate %16, %17, %19 in 0 : vector<4x1xf32>, vector<1x1xf32>, vector<8x1xf32> -> vector<13x1xf32>
    %c0_14 = arith.constant 0 : index
    %c0_15 = arith.constant 0 : index
    %21 = vector.load %arg5[%c0_14, %c0_15] : memref<16x13xf32, #tpu.memory_space<vmem>>, vector<16x13xf32>
    %cst_16 = arith.constant dense<0.000000e+00> : vector<16x1xf32>
    %22 = tpu.matmul %21, %20, %cst_16 {dimension_numbers = #tpu.dot_dimension_numbers<[1], [0], [0], [1], [0, 0, 1, 1], [], []>} : vector<16x13xf32>, vector<13x1xf32>, vector<16x1xf32> -> vector<16x1xf32>
    %c0_17 = arith.constant 0 : index
    %c0_18 = arith.constant 0 : index
    %c0_19 = arith.constant 0 : index
    %23 = vector.load %arg9[%c0_17, %c0_18, %c0_19] : memref<1x16x1xf32, #tpu.memory_space<vmem>>, vector<1x16x1xf32>
    %24 = vector.shape_cast %23 : vector<1x16x1xf32> to vector<16x1xf32>
    %25 = vector.shape_cast %22 : vector<16x1xf32> to vector<1x16x1xf32>
    tpu.vector_store %arg9[%c0_17, %c0_18, %c0_19], %25 {strides = array<i32>} : memref<1x16x1xf32, #tpu.memory_space<vmem>>, vector<1x16x1xf32>,
    %26 = arith.negf %22 : vector<16x1xf32>
    %27 = math.exp %26 : vector<16x1xf32>
    %cst_20 = arith.constant 1.000000e+00 : f32
    %28 = vector.broadcast %cst_20 : f32 to vector<16x1xf32>
    %29 = arith.addf %28, %27 : vector<16x1xf32>
    %30 = arith.divf %28, %29 : vector<16x1xf32>
    %31 = vector.broadcast %30 : vector<16x1xf32> to vector<16x64xf32>
    %32 = arith.mulf %1, %31 : vector<16x64xf32>
    %cst_21 = arith.constant dense<0xFF800000> : vector<64xf32>
    %33 = vector.multi_reduction <maximumf>, %32, %cst_21 [0] : vector<16x64xf32> to vector<64xf32>
    %34 = vector.shape_cast %33 : vector<64xf32> to vector<1x64xf32>
    %cst_22 = arith.constant dense<0.000000e+00> : vector<64xf32>
    %35 = vector.multi_reduction <add>, %32, %cst_22 [0] : vector<16x64xf32> to vector<64xf32>
    %36 = vector.shape_cast %35 : vector<64xf32> to vector<1x64xf32>
    %cst_23 = arith.constant 1.600000e+01 : f32
    %37 = vector.broadcast %cst_23 : f32 to vector<1x64xf32>
    %38 = arith.divf %36, %37 : vector<1x64xf32>
    %39 = tpu.concatenate %34, %38 in 1 : vector<1x64xf32>, vector<1x64xf32> -> vector<1x128xf32>
    %c0_24 = arith.constant 0 : index
    %c0_25 = arith.constant 0 : index
    %40 = vector.load %arg6[%c0_24, %c0_25] : memref<128x64xf32, #tpu.memory_space<vmem>>, vector<128x64xf32>
    %cst_26 = arith.constant dense<0.000000e+00> : vector<1x64xf32>
    %41 = tpu.matmul %39, %40, %cst_26 {dimension_numbers = #tpu.dot_dimension_numbers<[1], [0], [0], [1], [0, 0, 1, 1], [], []>} : vector<1x128xf32>, vector<128x64xf32>, vector<1x64xf32> -> vector<1x64xf32>
    %c0_27 = arith.constant 0 : index
    %42 = memref.load %arg7[%c0_27] : memref<2xf32, #tpu.memory_space<smem>>
    %43 = vector.broadcast %42 : f32 to vector<1x64xf32>
    %44 = arith.mulf %41, %43 : vector<1x64xf32>
    %c1 = arith.constant 1 : index
    %45 = memref.load %arg7[%c1] : memref<2xf32, #tpu.memory_space<smem>>
    %46 = vector.broadcast %45 : f32 to vector<1x64xf32>
    %47 = arith.addf %44, %46 : vector<1x64xf32>
    %c0_28 = arith.constant 0 : index
    %c0_29 = arith.constant 0 : index
    %c0_30 = arith.constant 0 : index
    %48 = vector.load %arg3[%c0_28, %c0_29, %c0_30] : memref<1x1x64xf32, #tpu.memory_space<vmem>>, vector<1x1x64xf32>
    %49 = vector.shape_cast %48 : vector<1x1x64xf32> to vector<1x64xf32>
    %50 = arith.addf %47, %49 : vector<1x64xf32>
    %c0_31 = arith.constant 0 : index
    %c0_32 = arith.constant 0 : index
    %c0_33 = arith.constant 0 : index
    %51 = vector.load %arg10[%c0_31, %c0_32, %c0_33] : memref<1x1x64xf32, #tpu.memory_space<vmem>>, vector<1x1x64xf32>
    %52 = vector.shape_cast %51 : vector<1x1x64xf32> to vector<1x64xf32>
    %53 = vector.shape_cast %50 : vector<1x64xf32> to vector<1x1x64xf32>
    tpu.vector_store %arg10[%c0_31, %c0_32, %c0_33], %53 {strides = array<i32>} : memref<1x1x64xf32, #tpu.memory_space<vmem>>, vector<1x1x64xf32>,
    %54 = arith.negf %50 : vector<1x64xf32>
    %55 = math.exp %54 : vector<1x64xf32>
    %cst_34 = arith.constant 1.000000e+00 : f32
    %56 = vector.broadcast %cst_34 : f32 to vector<1x64xf32>
    %57 = arith.addf %56, %55 : vector<1x64xf32>
    %58 = arith.divf %56, %57 : vector<1x64xf32>
    %59 = vector.broadcast %58 : vector<1x64xf32> to vector<16x64xf32>
    %60 = arith.mulf %32, %59 : vector<16x64xf32>
    %c0_35 = arith.constant 0 : index
    %c0_36 = arith.constant 0 : index
    %c0_37 = arith.constant 0 : index
    %61 = vector.load %arg8[%c0_35, %c0_36, %c0_37] : memref<1x16x64xf32, #tpu.memory_space<vmem>>, vector<1x16x64xf32>
    %62 = vector.shape_cast %61 : vector<1x16x64xf32> to vector<16x64xf32>
    %63 = vector.shape_cast %60 : vector<16x64xf32> to vector<1x16x64xf32>
    tpu.vector_store %arg8[%c0_35, %c0_36, %c0_37], %63 {strides = array<i32>} : memref<1x16x64xf32, #tpu.memory_space<vmem>>, vector<1x16x64xf32>,
    return
  }
  func.func @transform_0(%arg0: i32) -> (i32, i32, i32) {
    %c0_i32 = arith.constant 0 : i32
    %c0_i32_0 = arith.constant 0 : i32
    %c0_i32_1 = arith.constant 0 : i32
    return %arg0, %c0_i32, %c0_i32_0 : i32, i32, i32
  }
  func.func @transform_1(%arg0: i32) -> (i32, i32, i32) {
    %c0_i32 = arith.constant 0 : i32
    %c0_i32_0 = arith.constant 0 : i32
    %c0_i32_1 = arith.constant 0 : i32
    return %arg0, %c0_i32, %c0_i32_0 : i32, i32, i32
  }
  func.func @transform_2(%arg0: i32) -> (i32, i32, i32) {
    %c0_i32 = arith.constant 0 : i32
    %c0_i32_0 = arith.constant 0 : i32
    %c0_i32_1 = arith.constant 0 : i32
    return %arg0, %c0_i32, %c0_i32_0 : i32, i32, i32
  }
  func.func @transform_3(%arg0: i32) -> (i32, i32) {
    %c0_i32 = arith.constant 0 : i32
    %c0_i32_0 = arith.constant 0 : i32
    %c0_i32_1 = arith.constant 0 : i32
    return %c0_i32, %c0_i32_0 : i32, i32
  }
  func.func @transform_4(%arg0: i32) -> (i32, i32) {
    %c0_i32 = arith.constant 0 : i32
    %c0_i32_0 = arith.constant 0 : i32
    %c0_i32_1 = arith.constant 0 : i32
    return %c0_i32, %c0_i32_0 : i32, i32
  }
  func.func @transform_5(%arg0: i32) -> (i32, i32) {
    %c0_i32 = arith.constant 0 : i32
    %c0_i32_0 = arith.constant 0 : i32
    %c0_i32_1 = arith.constant 0 : i32
    return %c0_i32, %c0_i32_0 : i32, i32
  }
  func.func @transform_6(%arg0: i32) -> i32 {
    %c0_i32 = arith.constant 0 : i32
    %c0_i32_0 = arith.constant 0 : i32
    return %c0_i32 : i32
  }
  func.func @transform_7(%arg0: i32) -> (i32, i32, i32) {
    %c0_i32 = arith.constant 0 : i32
    %c0_i32_0 = arith.constant 0 : i32
    %c0_i32_1 = arith.constant 0 : i32
    return %arg0, %c0_i32, %c0_i32_0 : i32, i32, i32
  }
  func.func @transform_8(%arg0: i32) -> (i32, i32, i32) {
    %c0_i32 = arith.constant 0 : i32
    %c0_i32_0 = arith.constant 0 : i32
    %c0_i32_1 = arith.constant 0 : i32
    return %arg0, %c0_i32, %c0_i32_0 : i32, i32, i32
  }
  func.func @transform_9(%arg0: i32) -> (i32, i32, i32) {
    %c0_i32 = arith.constant 0 : i32
    %c0_i32_0 = arith.constant 0 : i32
    %c0_i32_1 = arith.constant 0 : i32
    return %arg0, %c0_i32, %c0_i32_0 : i32, i32, i32
  }
}

</mosaic_0001>

<llo_original>
// kernel: rcbam_forward.1
$region0: #{rcbam_forward.1}
  #allocation0 [shape = 'u32[]', space=smem, size = 0x4, offset = 0x4, fixed_abs, tag = 'smem constant byte address 0x4 - core index']
  #allocation1 [shape = 'u32[72,128]{1,0:T(1,128)}', space=vmem, size = 0x9000, scoped, tag = 'internal scratch']
  %s0 = inlined_call_operand.vmem [shape: f32[2,16,64], index: 0, kind: input, shape index: {}]
  %s1 = inlined_call_operand.vmem [shape: f32[2,8,1], index: 1, kind: input, shape index: {}]
  %s2 = inlined_call_operand.vmem [shape: f32[2,1,64], index: 2, kind: input, shape index: {}]
  %s3 = inlined_call_operand.vmem [shape: f32[4,17], index: 3, kind: input, shape index: {}]
  %s4 = inlined_call_operand.vmem [shape: f32[16,13], index: 4, kind: input, shape index: {}]
  %s5 = inlined_call_operand.vmem [shape: f32[128,64], index: 5, kind: input, shape index: {}]
  %s6 = inlined_call_operand.vmem [shape: f32[2], index: 6, kind: input, shape index: {}]
  %s7 = inlined_call_operand.vmem [shape: f32[2,16,64], index: 7, kind: output, shape index: {0}]
  %s8 = inlined_call_operand.vmem [shape: f32[2,16,1], index: 8, kind: output, shape index: {1}]
  %s9 = inlined_call_operand.vmem [shape: f32[2,1,64], index: 9, kind: output, shape index: {2}]
  %10 = xla_tuple %s7, %s8, %s9
  %s11 = sld [smem:[#allocation0]]
  $region81: #{rcbam_forward.1} parent=0
    _
  %s13 = ssub.s32 1, %s11
  %s14 = scalar_select 0, %s13, %s11
  $region1: #{rcbam_forward.1} parent=0
    #allocation2 [shape = 'u8[512]{0}', space=smem, size = 0x200, scoped, tag = 'input window, operand 6, single buffered']
    #allocation3 [shape = 's32[2]{0}', space=sflag, size = 0x8, scoped, tag = 'scoped memory for rcbam_forward.1']
    %15 = vsyncpa [#allocation3], 0
    loop: start=0, step=1, limit=4
    $region2: #{rcbam_forward.1} parent=1 // loop_pre_header
      _
    $region3: #{rcbam_forward.1} parent=1 // loop_header
      %s17 = sphi 0, %s21
      %p18 = scmp.ge.s32.totalorder %s17, 4
      %s27 = sphi 0, %s29
      %s30 = sphi 0, %s27
      %s31 = sphi 0, %s30
      %s47 = sphi 0, %s31
      %s53 = sphi 0, %s55
      %s56 = sphi 0, %s53
      %s57 = sphi 0, %s56
      %s73 = sphi 0, %s57
      %s79 = sphi 0, %s81
      %s82 = sphi 0, %s79
      %s83 = sphi 0, %s82
      %s99 = sphi 0, %s83
      %s103 = sphi 0, %s103
      %s105 = sphi 0, %s103
      %s106 = sphi 0, %s105
      %s120 = sphi 0, %s106
      %s124 = sphi 0, %s124
      %s126 = sphi 0, %s124
      %s127 = sphi 0, %s126
      %s141 = sphi 0, %s127
      %s145 = sphi 0, %s145
      %s147 = sphi 0, %s145
      %s148 = sphi 0, %s147
      %s162 = sphi 0, %s148
      %s166 = sphi 0, %s166
      %s168 = sphi 0, %s166
      %s169 = sphi 0, %s168
      %s183 = sphi 0, %s169
      %s189 = sphi 0, %s191
      %s192 = sphi 0, %s189
      %s193 = sphi 0, %s192
      %s209 = sphi 0, %s193
      %s215 = sphi 0, %s217
      %s218 = sphi 0, %s215
      %s219 = sphi 0, %s218
      %s235 = sphi 0, %s219
      %s241 = sphi 0, %s243
      %s244 = sphi 0, %s241
      %s245 = sphi 0, %s244
      %s261 = sphi 0, %s245
    $region4: #{rcbam_forward.1} parent=1 // loop_header_branch
      %20 = sbr.rel (%p18) target = $region8
    $region5: #{rcbam_forward.1} parent=1 // loop_body
      %s22 = ssub.s32 %s17, 1
      %s23 = ssub.s32 %s17, 2
      %s24 = sadd.s32 %s17, 1
      %s25 = ssub.s32 %s17, %s24
      %p26 = scmp.eq.s32.totalorder %s25, 0
      %s28 = sadd.s32 %s27, 1
      %s29 = scalar_select %p26, %s27, %s28
      %p32 = pneg %p26
      %p33 = scmp.eq.s32.totalorder %s17, 1
      %p34 = por %p32, %p33
      %p35 = scmp.ne.s32.totalorder %s27, %s30
      %p36 = scmp.eq.s32.totalorder %s17, 0
      %p37 = por %p35, %p36
      %p38 = scmp.ne.s32.totalorder %s27, %s30
      %p39 = scmp.eq.s32.totalorder %s22, 1
      %p40 = por %p38, %p39
      %p41 = scmp.ne.s32.totalorder %s30, %s31
      %p42 = scmp.eq.s32.totalorder %s22, 0
      %p43 = por %p41, %p42
      %p44 = scmp.ne.s32.totalorder %s30, %s31
      %p45 = scmp.eq.s32.totalorder %s23, 1
      %p46 = por %p44, %p45
      %p48 = scmp.ne.s32.totalorder %s31, %s47
      %p49 = scmp.eq.s32.totalorder %s23, 0
      %p50 = por %p48, %p49
      %s51 = ssub.s32 %s17, %s24
      %p52 = scmp.eq.s32.totalorder %s51, 0
      %s54 = sadd.s32 %s53, 1
      %s55 = scalar_select %p52, %s53, %s54
      %p58 = pneg %p52
      %p59 = scmp.eq.s32.totalorder %s17, 1
      %p60 = por %p58, %p59
      %p61 = scmp.ne.s32.totalorder %s53, %s56
      %p62 = scmp.eq.s32.totalorder %s17, 0
      %p63 = por %p61, %p62
      %p64 = scmp.ne.s32.totalorder %s53, %s56
      %p65 = scmp.eq.s32.totalorder %s22, 1
      %p66 = por %p64, %p65
      %p67 = scmp.ne.s32.totalorder %s56, %s57
      %p68 = scmp.eq.s32.totalorder %s22, 0
      %p69 = por %p67, %p68
      %p70 = scmp.ne.s32.totalorder %s56, %s57
      %p71 = scmp.eq.s32.totalorder %s23, 1
      %p72 = por %p70, %p71
      %p74 = scmp.ne.s32.totalorder %s57, %s73
      %p75 = scmp.eq.s32.totalorder %s23, 0
      %p76 = por %p74, %p75
      %s77 = ssub.s32 %s17, %s24
      %p78 = scmp.eq.s32.totalorder %s77, 0
      %s80 = sadd.s32 %s79, 1
      %s81 = scalar_select %p78, %s79, %s80
      %p84 = pneg %p78
      %p85 = scmp.eq.s32.totalorder %s17, 1
      %p86 = por %p84, %p85
      %p87 = scmp.ne.s32.totalorder %s79, %s82
      %p88 = scmp.eq.s32.totalorder %s17, 0
      %p89 = por %p87, %p88
      %p90 = scmp.ne.s32.totalorder %s79, %s82
      %p91 = scmp.eq.s32.totalorder %s22, 1
      %p92 = por %p90, %p91
      %p93 = scmp.ne.s32.totalorder %s82, %s83
      %p94 = scmp.eq.s32.totalorder %s22, 0
      %p95 = por %p93, %p94
      %p96 = scmp.ne.s32.totalorder %s82, %s83
      %p97 = scmp.eq.s32.totalorder %s23, 1
      %p98 = por %p96, %p97
      %p100 = scmp.ne.s32.totalorder %s83, %s99
      %p101 = scmp.eq.s32.totalorder %s23, 0
      %p102 = por %p100, %p101
      %s104 = sadd.s32 %s103, 1
      %p107 = scmp.eq.s32.totalorder %s17, 1
      %p108 = scmp.ne.s32.totalorder %s103, %s105
      %p109 = scmp.eq.s32.totalorder %s17, 0
      %p110 = por %p108, %p109
      %p111 = scmp.ne.s32.totalorder %s103, %s105
      %p112 = scmp.eq.s32.totalorder %s22, 1
      %p113 = por %p111, %p112
      %p114 = scmp.ne.s32.totalorder %s105, %s106
      %p115 = scmp.eq.s32.totalorder %s22, 0
      %p116 = por %p114, %p115
      %p117 = scmp.ne.s32.totalorder %s105, %s106
      %p118 = scmp.eq.s32.totalorder %s23, 1
      %p119 = por %p117, %p118
      %p121 = scmp.ne.s32.totalorder %s106, %s120
      %p122 = scmp.eq.s32.totalorder %s23, 0
      %p123 = por %p121, %p122
      %s125 = sadd.s32 %s124, 1
      %p128 = scmp.eq.s32.totalorder %s17, 1
      %p129 = scmp.ne.s32.totalorder %s124, %s126
      %p130 = scmp.eq.s32.totalorder %s17, 0
      %p131 = por %p129, %p130
      %p132 = scmp.ne.s32.totalorder %s124, %s126
      %p133 = scmp.eq.s32.totalorder %s22, 1
      %p134 = por %p132, %p133
      %p135 = scmp.ne.s32.totalorder %s126, %s127
      %p136 = scmp.eq.s32.totalorder %s22, 0
      %p137 = por %p135, %p136
      %p138 = scmp.ne.s32.totalorder %s126, %s127
      %p139 = scmp.eq.s32.totalorder %s23, 1
      %p140 = por %p138, %p139
      %p142 = scmp.ne.s32.totalorder %s127, %s141
      %p143 = scmp.eq.s32.totalorder %s23, 0
      %p144 = por %p142, %p143
      %s146 = sadd.s32 %s145, 1
      %p149 = scmp.eq.s32.totalorder %s17, 1
      %p150 = scmp.ne.s32.totalorder %s145, %s147
      %p151 = scmp.eq.s32.totalorder %s17, 0
      %p152 = por %p150, %p151
      %p153 = scmp.ne.s32.totalorder %s145, %s147
      %p154 = scmp.eq.s32.totalorder %s22, 1
      %p155 = por %p153, %p154
      %p156 = scmp.ne.s32.totalorder %s147, %s148
      %p157 = scmp.eq.s32.totalorder %s22, 0
      %p158 = por %p156, %p157
      %p159 = scmp.ne.s32.totalorder %s147, %s148
      %p160 = scmp.eq.s32.totalorder %s23, 1
      %p161 = por %p159, %p160
      %p163 = scmp.ne.s32.totalorder %s148, %s162
      %p164 = scmp.eq.s32.totalorder %s23, 0
      %p165 = por %p163, %p164
      %s167 = sadd.s32 %s166, 1
      %p170 = scmp.eq.s32.totalorder %s17, 1
      %p171 = scmp.ne.s32.totalorder %s166, %s168
      %p172 = scmp.eq.s32.totalorder %s17, 0
      %p173 = por %p171, %p172
      %p174 = scmp.ne.s32.totalorder %s166, %s168
      %p175 = scmp.eq.s32.totalorder %s22, 1
      %p176 = por %p174, %p175
      %p177 = scmp.ne.s32.totalorder %s168, %s169
      %p178 = scmp.eq.s32.totalorder %s22, 0
      %p179 = por %p177, %p178
      %p180 = scmp.ne.s32.totalorder %s168, %s169
      %p181 = scmp.eq.s32.totalorder %s23, 1
      %p182 = por %p180, %p181
      %p184 = scmp.ne.s32.totalorder %s169, %s183
      %p185 = scmp.eq.s32.totalorder %s23, 0
      %p186 = por %p184, %p185
      %s187 = ssub.s32 %s17, %s24
      %p188 = scmp.eq.s32.totalorder %s187, 0
      %s190 = sadd.s32 %s189, 1
      %s191 = scalar_select %p188, %s189, %s190
      %p194 = pneg %p188
      %p195 = scmp.eq.s32.totalorder %s17, 1
      %p196 = por %p194, %p195
      %p197 = scmp.ne.s32.totalorder %s189, %s192
      %p198 = scmp.eq.s32.totalorder %s17, 0
      %p199 = por %p197, %p198
      %p200 = scmp.ne.s32.totalorder %s189, %s192
      %p201 = scmp.eq.s32.totalorder %s22, 1
      %p202 = por %p200, %p201
      %p203 = scmp.ne.s32.totalorder %s192, %s193
      %p204 = scmp.eq.s32.totalorder %s22, 0
      %p205 = por %p203, %p204
      %p206 = scmp.ne.s32.totalorder %s192, %s193
      %p207 = scmp.eq.s32.totalorder %s23, 1
      %p208 = por %p206, %p207
      %p210 = scmp.ne.s32.totalorder %s193, %s209
      %p211 = scmp.eq.s32.totalorder %s23, 0
      %p212 = por %p210, %p211
      %s213 = ssub.s32 %s17, %s24
      %p214 = scmp.eq.s32.totalorder %s213, 0
      %s216 = sadd.s32 %s215, 1
      %s217 = scalar_select %p214, %s215, %s216
      %p220 = pneg %p214
      %p221 = scmp.eq.s32.totalorder %s17, 1
      %p222 = por %p220, %p221
      %p223 = scmp.ne.s32.totalorder %s215, %s218
      %p224 = scmp.eq.s32.totalorder %s17, 0
      %p225 = por %p223, %p224
      %p226 = scmp.ne.s32.totalorder %s215, %s218
      %p227 = scmp.eq.s32.totalorder %s22, 1
      %p228 = por %p226, %p227
      %p229 = scmp.ne.s32.totalorder %s218, %s219
      %p230 = scmp.eq.s32.totalorder %s22, 0
      %p231 = por %p229, %p230
      %p232 = scmp.ne.s32.totalorder %s218, %s219
      %p233 = scmp.eq.s32.totalorder %s23, 1
      %p234 = por %p232, %p233
      %p236 = scmp.ne.s32.totalorder %s219, %s235
      %p237 = scmp.eq.s32.totalorder %s23, 0
      %p238 = por %p236, %p237
      %s239 = ssub.s32 %s17, %s24
      %p240 = scmp.eq.s32.totalorder %s239, 0
      %s242 = sadd.s32 %s241, 1
      %s243 = scalar_select %p240, %s241, %s242
      %p246 = pneg %p240
      %p247 = scmp.eq.s32.totalorder %s17, 1
      %p248 = por %p246, %p247
      %p249 = scmp.ne.s32.totalorder %s241, %s244
      %p250 = scmp.eq.s32.totalorder %s17, 0
      %p251 = por %p249, %p250
      %p252 = scmp.ne.s32.totalorder %s241, %s244
      %p253 = scmp.eq.s32.totalorder %s22, 1
      %p254 = por %p252, %p253
      %p255 = scmp.ne.s32.totalorder %s244, %s245
      %p256 = scmp.eq.s32.totalorder %s22, 0
      %p257 = por %p255, %p256
      %p258 = scmp.ne.s32.totalorder %s244, %s245
      %p259 = scmp.eq.s32.totalorder %s23, 1
      %p260 = por %p258, %p259
      %p262 = scmp.ne.s32.totalorder %s245, %s261
      %p263 = scmp.eq.s32.totalorder %s23, 0
      %p264 = por %p262, %p263
      %p265 = scmp.le.s32.totalorder 1, %s17
      %p266 = scmp.lt.s32.totalorder %s17, 3
      %p267 = pnand %p265, %p266
      %p268 = pneg %p267
      // Predicated region
      $region9: #{rcbam_forward.1} parent=5 // pred_check
        _
      $region10: #{rcbam_forward.1} parent=5 // pred_check_branch
        %270 = sbr.rel (%p267) target = $region12
      $region11: #{rcbam_forward.1} parent=5 // pred_region
        %s271 = ssub.s32 %s17, 1
        // Predicated region
        $region13: #{rcbam_forward.1} parent=11 // pred_check
          %p272 = pneg %p116
        $region14: #{rcbam_forward.1} parent=11 // pred_check_branch
          %274 = sbr.rel (%p272) target = $region16
        $region15: #{rcbam_forward.1} parent=11 // pred_region
          _
        $region16: #{rcbam_forward.1} parent=11 // pred_fallthru
          _
        // Predicated region
        $region17: #{rcbam_forward.1} parent=11 // pred_check
          %p275 = pneg %p137
        $region18: #{rcbam_forward.1} parent=11 // pred_check_branch
          %277 = sbr.rel (%p275) target = $region20
        $region19: #{rcbam_forward.1} parent=11 // pred_region
          _
        $region20: #{rcbam_forward.1} parent=11 // pred_fallthru
          _
        // Predicated region
        $region21: #{rcbam_forward.1} parent=11 // pred_check
          %p278 = pneg %p158
        $region22: #{rcbam_forward.1} parent=11 // pred_check_branch
          %280 = sbr.rel (%p278) target = $region24
        $region23: #{rcbam_forward.1} parent=11 // pred_region
          _
        $region24: #{rcbam_forward.1} parent=11 // pred_fallthru
          _
        // Predicated region
        $region25: #{rcbam_forward.1} parent=11 // pred_check
          %p281 = pneg %p179
        $region26: #{rcbam_forward.1} parent=11 // pred_check_branch
          %283 = sbr.rel (%p281) target = $region28
        $region27: #{rcbam_forward.1} parent=11 // pred_region
          %285 = vsyncadd [#allocation3], 0
          %s287 = sshll.u32 %s6, 4
          %s288 = int_to_ptr.vmem [resolvable:$true] %s287
          %290 = dma.vmem_to_smem %s288, 16, [#allocation2], [#allocation3]
        $region28: #{rcbam_forward.1} parent=11 // pred_fallthru
          _
      $region12: #{rcbam_forward.1} parent=5 // pred_fallthru
        _
      %p291 = scmp.lt.s32.totalorder %s17, 2
      // Predicated region
      $region29: #{rcbam_forward.1} parent=5 // pred_check
        %p292 = pneg %p291
      $region30: #{rcbam_forward.1} parent=5 // pred_check_branch
        %294 = sbr.rel (%p292) target = $region32
      $region31: #{rcbam_forward.1} parent=5 // pred_region
        // Predicated region
        $region33: #{rcbam_forward.1} parent=31 // pred_check
          %p295 = pneg %p37
        $region34: #{rcbam_forward.1} parent=31 // pred_check_branch
          %297 = sbr.rel (%p295) target = $region36
        $region35: #{rcbam_forward.1} parent=31 // pred_region
          %p298 = scmp.lt.s32.totalorder %s17, 1
          %s299 = scalar_select %p298, %s17, 1
          %s300 = smul.addr %s299, 2
          %s301 = smul.addr %s300, 8
          %s302 = scalar_lea.vmem %s0, %s301
        $region36: #{rcbam_forward.1} parent=31 // pred_fallthru
          _
        // Predicated region
        $region37: #{rcbam_forward.1} parent=31 // pred_check
          %p303 = pneg %p63
        $region38: #{rcbam_forward.1} parent=31 // pred_check_branch
          %305 = sbr.rel (%p303) target = $region40
        $region39: #{rcbam_forward.1} parent=31 // pred_region
          %p306 = scmp.lt.s32.totalorder %s17, 1
          %s307 = scalar_select %p306, %s17, 1
          %s308 = smul.addr %s307, 8
          %s309 = scalar_lea.vmem %s1, %s308
        $region40: #{rcbam_forward.1} parent=31 // pred_fallthru
          _
        // Predicated region
        $region41: #{rcbam_forward.1} parent=31 // pred_check
          %p310 = pneg %p89
        $region42: #{rcbam_forward.1} parent=31 // pred_check_branch
          %312 = sbr.rel (%p310) target = $region44
        $region43: #{rcbam_forward.1} parent=31 // pred_region
          %p313 = scmp.lt.s32.totalorder %s17, 1
          %s314 = scalar_select %p313, %s17, 1
          %s315 = scalar_lea.vmem %s2, %s314
        $region44: #{rcbam_forward.1} parent=31 // pred_fallthru
          _
      $region32: #{rcbam_forward.1} parent=5 // pred_fallthru
        _
      %p316 = scmp.le.s32.totalorder 1, %s17
      %p317 = scmp.lt.s32.totalorder %s17, 3
      %p318 = pnand %p316, %p317
      %p319 = pneg %p318
      // Predicated region
      $region45: #{rcbam_forward.1} parent=5 // pred_check
        _
      $region46: #{rcbam_forward.1} parent=5 // pred_check_branch
        %321 = sbr.rel (%p318) target = $region48
      $region47: #{rcbam_forward.1} parent=5 // pred_region
        %s322 = ssub.s32 %s17, 1
        // Predicated region
        $region49: #{rcbam_forward.1} parent=47 // pred_check
          %p323 = pneg %p179
        $region50: #{rcbam_forward.1} parent=47 // pred_check_branch
          %325 = sbr.rel (%p323) target = $region52
        $region51: #{rcbam_forward.1} parent=47 // pred_region
          %327 = dma.done [#allocation3], 16
        $region52: #{rcbam_forward.1} parent=47 // pred_fallthru
          _
        %328 = sfence
        %p329 = scmp.lt.s32.totalorder %s22, 1
        %s330 = scalar_select %p329, %s22, 1
        %s331 = smul.addr %s330, 2
        %s332 = smul.addr %s331, 8
        %s333 = scalar_lea.vmem %s0, %s332
        %p334 = pneg %p43
        %p335 = pneg %p40
        %p336 = scmp.lt.s32.totalorder %s22, 1
        %s337 = scalar_select %p336, %s22, 1
        %s338 = smul.addr %s337, 8
        %s339 = scalar_lea.vmem %s1, %s338
        %p340 = pneg %p69
        %p341 = pneg %p66
        %p342 = scmp.lt.s32.totalorder %s22, 1
        %s343 = scalar_select %p342, %s22, 1
        %s344 = scalar_lea.vmem %s2, %s343
        %p345 = pneg %p95
        %p346 = pneg %p92
        %p347 = pneg %p116
        %p348 = pneg %p113
        %p349 = pneg %p137
        %p350 = pneg %p134
        %p351 = pneg %p158
        %p352 = pneg %p155
        %p353 = pneg %p179
        %p354 = pneg %p176
        %p355 = pneg %p205
        %p356 = pneg %p202
        %p357 = scmp.lt.s32.totalorder %s22, 1
        %s358 = scalar_select %p357, %s22, 1
        %s359 = smul.addr %s358, 2
        %s360 = smul.addr %s359, 8
        %s361 = scalar_lea.vmem %s7, %s360
        %p362 = pneg %p231
        %p363 = pneg %p228
        %p364 = scmp.lt.s32.totalorder %s22, 1
        %s365 = scalar_select %p364, %s22, 1
        %s366 = smul.addr %s365, 2
        %s367 = smul.addr %s366, 8
        %s368 = scalar_lea.vmem %s8, %s367
        %p369 = pneg %p257
        %p370 = pneg %p254
        %p371 = scmp.lt.s32.totalorder %s22, 1
        %s372 = scalar_select %p371, %s22, 1
        %s373 = scalar_lea.vmem %s9, %s372
        %p374 = scmp.lt.s32.totalorder %s22, 1
        %s375 = scalar_select %p374, %s22, 1
        %s376 = smul.addr %s375, 2
        %s377 = smul.addr %s376, 8
        %s378 = scalar_lea.vmem %s0, %s377
        %p379 = scmp.lt.s32.totalorder %s22, 1
        %s380 = scalar_select %p379, %s22, 1
        %s381 = smul.addr %s380, 8
        %s382 = scalar_lea.vmem %s1, %s381
        %p383 = scmp.lt.s32.totalorder %s22, 1
        %s384 = scalar_select %p383, %s22, 1
        %s385 = scalar_lea.vmem %s2, %s384
        %p386 = scmp.lt.s32.totalorder %s22, 1
        %s387 = scalar_select %p386, %s22, 1
        %s388 = smul.addr %s387, 2
        %s389 = smul.addr %s388, 8
        %s390 = scalar_lea.vmem %s7, %s389
        %p391 = scmp.lt.s32.totalorder %s22, 1
        %s392 = scalar_select %p391, %s22, 1
        %s393 = smul.addr %s392, 2
        %s394 = smul.addr %s393, 8
        %s395 = scalar_lea.vmem %s8, %s394
        %p396 = scmp.lt.s32.totalorder %s22, 1
        %s397 = scalar_select %p396, %s22, 1
        %s398 = scalar_lea.vmem %s9, %s397
        %v399 = vld [vmem:[%s378] sm:$0xff]
        %v400 = vld [vmem:[%s378 + $0x8] sm:$0xff]
        %vm401 = vcmask 523264
        %v402 = vsel %vm401, %v399, 0.0
        %403 = vadd.xlane.f32.xlu0 %v402
        %v404 = vpop.xlane.xlu0 %403
        %v405 = vsel %vm401, %v400, 0.0
        %406 = vadd.xlane.f32.xlu0 %v405
        %v407 = vpop.xlane.xlu0 %406
        %v408 = vrcp.pop 64.0
        %v409 = vmul.f32 64.0, %v408
        %v410 = vsub.f32 1.0, %v409
        %v411 = vmul.f32 %v408, %v410
        %v412 = vadd.f32 %v408, %v411
        %vm413 = vweird.f32 %v408
        %v414 = vsel %vm413, %v408, %v412
        %v415 = vmul.f32 %v404, %v414
        %v416 = vmul.f32 %v407, %v414
        %v417 = vsel %vm401, %v399, -inf
        %418 = vmax.xlane.f32.xlu0 %v417
        %v419 = vpop.xlane.xlu0 %418
        %v420 = vsel %vm401, %v400, -inf
        %421 = vmax.xlane.f32.xlu0 %v420
        %v422 = vpop.xlane.xlu0 %421
        %vm423 = vcmask 7168
        %v424 = vsel %vm423, %v415, %v419
        %v425 = vsel %vm423, %v416, %v422
        %v426 = vld [vmem:[%s3] sm:$0xf]
        %vm427 = vcmask 138240
        %v429 = vsel %vm427, %v426, 0
        %vm431 = vcmask 1040384
        %v433 = vsel %vm431, 1.0, 0
        %435 = vmatpush.msra.mxu0 0.0
        %436 = vmatpush.msra.mxu0 0.0
        %437 = vmatpush.msra.mxu0 0.0
        %438 = vmatpush.msra.mxu0 0.0
        %439 = vmatpush.msra.mxu0 0.0
        %440 = vmatpush.msra.mxu0 0.0
        %441 = vmatpush.msra.mxu0 0.0
        %442 = vmatpush.msra.mxu0 0.0
        %443 = vmatpush.msra.mxu0 0.0
        %444 = vmatpush.msra.mxu0 0.0
        %445 = vmatpush.msra.mxu0 0.0
        %446 = vmatpush.msra.mxu0 0.0
        %447 = vmatpush.msra.mxu0 0.0
        %448 = vmatpush.msra.mxu0 %v433
        %449 = vmatpush.msra.mxu0 %v425
        %450 = vmatpush.msra.mxu0 %v424
        %451 = vmatmul.f32.gmra.mxu0 %v429
        %v452 = vpop.f32.mrf.mxu0
        %v453 = vadd.f32 0.0, %v452
        %454 = vdwg.mxu0
        %v455 = vmax.f32 %v453, 0.0
        %vm456 = vcmask 11264
        %v457 = vsel %vm456, %v455, 0.0
        %458 = vadd.xlane.f32.xlu0 %v457
        %v459 = vpop.xlane.xlu0 %458
        %v460 = vld [vmem:[%s382] sm:$0xff]
        %v462 = vrot.slane %v460, 3
        %vm464 = vcmask 1043456
        %v465 = vsel %vm464, %v459, 1.0
        %vm466 = vcmask 1044480
        %v467 = vsel %vm466, %v465, %v462
        %v468 = vld [vmem:[%s4] sm:$0xff]
        %v469 = vld [vmem:[%s4 + $0x8] sm:$0xff]
        %vm470 = vcmask 105472
        %v472 = vsel %vm470, %v468, 0
        %v475 = vsel %vm470, %v469, 0
        %v477 = vsel %vm466, %v462, 0
        %479 = vmatpush.msra.mxu0 0.0
        %480 = vmatpush.msra.mxu0 0.0
        %481 = vmatpush.msra.mxu0 0.0
        %482 = vmatpush.msra.mxu0 0.0
        %483 = vmatpush.msra.mxu0 0.0
        %484 = vmatpush.msra.mxu0 0.0
        %485 = vmatpush.msra.mxu0 0.0
        %486 = vmatpush.msra.mxu0 0.0
        %487 = vmatpush.msra.mxu0 0.0
        %488 = vmatpush.msra.mxu0 0.0
        %489 = vmatpush.msra.mxu0 0.0
        %490 = vmatpush.msra.mxu0 0.0
        %491 = vmatpush.msra.mxu0 0.0
        %492 = vmatpush.msra.mxu0 0.0
        %493 = vmatpush.msra.mxu0 %v477
        %494 = vmatpush.msra.mxu0 %v467
        %495 = vmatmul.f32.gmra.mxu0 %v472
        %v496 = vpop.f32.mrf.mxu0
        %v497 = vadd.f32 0.0, %v496
        %498 = vmatmul.f32.gmra.mxu0 %v475
        %v499 = vpop.f32.mrf.mxu0
        %v500 = vadd.f32 0.0, %v499
        %501 = vdwg.mxu0
        %502 = vst.msk [vmem:[%s395] sm:$0xff] %vm423, %v497
        %503 = vst.msk [vmem:[%s395 + $0x8] sm:$0xff] %vm423, %v500
        %v504 = vxor.u32 %v497, 2147483648
        %v505 = vxor.u32 %v500, 2147483648
        %v506 = vmul.f32 %v504, 1.442695
        %v507 = vpow.pop %v506
        %v508 = vmul.f32 %v505, 1.442695
        %v509 = vpow.pop %v508
        %v510 = vadd.f32 %v507, 1.0
        %v511 = vadd.f32 %v509, 1.0
        %v512 = vrcp.pop %v510
        %v513 = vmul.f32 %v510, %v512
        %v514 = vsub.f32 1.0, %v513
        %v515 = vmul.f32 %v512, %v514
        %v516 = vadd.f32 %v512, %v515
        %vm517 = vweird.f32 %v510
        %vm518 = vweird.f32 %v512
        %vm519 = vmor %vm517, %vm518
        %v520 = vsel %vm519, %v512, %v516
        %v521 = vand.u32 2147483647, %v510
        %vm522 = vcmp.eq.f32.partialorder %v521, 8.507059e+37
        %v523 = vand.u32 %v510, 2147483648
        %v524 = vor.u32 1.1754944e-38, %v523
        %v525 = vsel %vm522, %v524, %v520
        %v526 = vmul.f32 1.0, %v525
        %v527 = vrcp.pop %v511
        %v528 = vmul.f32 %v511, %v527
        %v529 = vsub.f32 1.0, %v528
        %v530 = vmul.f32 %v527, %v529
        %v531 = vadd.f32 %v527, %v530
        %vm532 = vweird.f32 %v511
        %vm533 = vweird.f32 %v527
        %vm534 = vmor %vm532, %vm533
        %v535 = vsel %vm534, %v527, %v531
        %v536 = vand.u32 2147483647, %v511
        %vm537 = vcmp.eq.f32.partialorder %v536, 8.507059e+37
        %v538 = vand.u32 %v511, 2147483648
        %v539 = vor.u32 1.1754944e-38, %v538
        %v540 = vsel %vm537, %v539, %v535
        %v541 = vmul.f32 1.0, %v540
        %543 = vset.pattern.permute.xlu0 0
        %544 = vperm.xlu0 %543, %v526
        %v545 = vpop.permute.xlu0 %544
        %548 = vset.pattern.permute.xlu0 0
        %549 = vperm.xlu0 %548, %v541
        %v550 = vpop.permute.xlu0 %549
        %v552 = vmul.f32 %v399, %v545
        %v553 = vmul.f32 %v400, %v550
        %v554 = vsel %vm401, %v552, -inf
        %v555 = vsel %vm401, %v553, -inf
        %v556 = vmax.f32 %v554, %v555
        %v557 = vrot.slane %v556, 4
        %v558 = vmax.f32 %v556, %v557
        %v559 = vrot.slane %v558, 2
        %v560 = vmax.f32 %v558, %v559
        %v561 = vrot.slane %v560, 1
        %v562 = vmax.f32 %v560, %v561
        %v563 = vsel %vm401, %v552, 0.0
        %v564 = vsel %vm401, %v553, 0.0
        %v565 = vadd.f32 %v563, %v564
        %v566 = vrot.slane %v565, 4
        %v567 = vadd.f32 %v565, %v566
        %v568 = vrot.slane %v567, 2
        %v569 = vadd.f32 %v567, %v568
        %v570 = vrot.slane %v569, 1
        %v571 = vadd.f32 %v569, %v570
        %v572 = vrcp.pop 16.0
        %v573 = vmul.f32 16.0, %v572
        %v574 = vsub.f32 1.0, %v573
        %v575 = vmul.f32 %v572, %v574
        %v576 = vadd.f32 %v572, %v575
        %vm577 = vweird.f32 %v572
        %v578 = vsel %vm577, %v572, %v576
        %v579 = vmul.f32 %v571, %v578
        %581 = vrot.lane.b32.xlu0 %v579, 64
        %v582 = vpop.permute.xlu0 %581
        %v584 = vsel %vm401, %v562, %v582
        %v585 = vld [vmem:[%s5] sm:$0xff]
        %v586 = vld [vmem:[%s5 + $0x8] sm:$0xff]
        %v587 = vld [vmem:[%s5 + $0x10] sm:$0xff]
        %v588 = vld [vmem:[%s5 + $0x18] sm:$0xff]
        %v589 = vld [vmem:[%s5 + $0x20] sm:$0xff]
        %v590 = vld [vmem:[%s5 + $0x28] sm:$0xff]
        %v591 = vld [vmem:[%s5 + $0x30] sm:$0xff]
        %v592 = vld [vmem:[%s5 + $0x38] sm:$0xff]
        %v593 = vld [vmem:[%s5 + $0x40] sm:$0xff]
        %v594 = vld [vmem:[%s5 + $0x48] sm:$0xff]
        %v595 = vld [vmem:[%s5 + $0x50] sm:$0xff]
        %v596 = vld [vmem:[%s5 + $0x58] sm:$0xff]
        %v597 = vld [vmem:[%s5 + $0x60] sm:$0xff]
        %v598 = vld [vmem:[%s5 + $0x68] sm:$0xff]
        %v599 = vld [vmem:[%s5 + $0x70] sm:$0xff]
        %v600 = vld [vmem:[%s5 + $0x78] sm:$0xff]
        %601 = vmatpush.msra.mxu0 %v600
        %602 = vmatpush.msra.mxu0 %v599
        %603 = vmatpush.msra.mxu0 %v598
        %604 = vmatpush.msra.mxu0 %v597
        %605 = vmatpush.msra.mxu0 %v596
        %606 = vmatpush.msra.mxu0 %v595
        %607 = vmatpush.msra.mxu0 %v594
        %608 = vmatpush.msra.mxu0 %v593
        %609 = vmatpush.msra.mxu0 %v592
        %610 = vmatpush.msra.mxu0 %v591
        %611 = vmatpush.msra.mxu0 %v590
        %612 = vmatpush.msra.mxu0 %v589
        %613 = vmatpush.msra.mxu0 %v588
        %614 = vmatpush.msra.mxu0 %v587
        %615 = vmatpush.msra.mxu0 %v586
        %616 = vmatpush.msra.mxu0 %v585
        %617 = vmatmul.f32.gmra.mxu0 %v584
        %v618 = vpop.f32.mrf.mxu0
        %v619 = vadd.f32 0.0, %v618
        %620 = vdwg.mxu0
        %s621 = sld [smem:[#allocation2]]
        %v622 = vstv %s621
        %v623 = vmul.f32 %v619, %v622
        %s624 = sld [smem:[#allocation2 + $0x1]]
        %v625 = vstv %s624
        %v626 = vadd.f32 %v623, %v625
        %v627 = vld [vmem:[%s385] sm:$0x1]
        %v628 = vadd.f32 %v626, %v627
        %vm629 = vcmask 516096
        %630 = vst.msk [vmem:[%s398] sm:$0x1] %vm629, %v628
        %v631 = vxor.u32 %v628, 2147483648
        %v632 = vmul.f32 %v631, 1.442695
        %v633 = vpow.pop %v632
        %v634 = vadd.f32 %v633, 1.0
        %v635 = vrcp.pop %v634
        %v636 = vmul.f32 %v634, %v635
        %v637 = vsub.f32 1.0, %v636
        %v638 = vmul.f32 %v635, %v637
        %v639 = vadd.f32 %v635, %v638
        %vm640 = vweird.f32 %v634
        %vm641 = vweird.f32 %v635
        %vm642 = vmor %vm640, %vm641
        %v643 = vsel %vm642, %v635, %v639
        %v644 = vand.u32 2147483647, %v634
        %vm645 = vcmp.eq.f32.partialorder %v644, 8.507059e+37
        %v646 = vand.u32 %v634, 2147483648
        %v647 = vor.u32 1.1754944e-38, %v646
        %v648 = vsel %vm645, %v647, %v643
        %v649 = vmul.f32 1.0, %v648
        %v650 = vperm.slane %v649, 0
        %v651 = vmul.f32 %v552, %v650
        %v652 = vmul.f32 %v553, %v650
        %653 = vst.msk [vmem:[%s390] sm:$0xff] %vm401, %v651
        %654 = vst.msk [vmem:[%s390 + $0x8] sm:$0xff] %vm401, %v652
        %p655 = scmp.lt.s32.totalorder %s22, 1
        %s656 = scalar_select %p655, %s22, 1
        %s657 = smul.addr %s656, 2
        %s658 = smul.addr %s657, 8
        %s659 = scalar_lea.vmem %s7, %s658
        %p660 = scmp.lt.s32.totalorder %s22, 1
        %s661 = scalar_select %p660, %s22, 1
        %s662 = smul.addr %s661, 2
        %s663 = smul.addr %s662, 8
        %s664 = scalar_lea.vmem %s8, %s663
        %p665 = scmp.lt.s32.totalorder %s22, 1
        %s666 = scalar_select %p665, %s22, 1
        %s667 = scalar_lea.vmem %s9, %s666
        // Predicated region
        $region53: #{rcbam_forward.1} parent=47 // pred_check
          %p668 = pneg %p202
        $region54: #{rcbam_forward.1} parent=47 // pred_check_branch
          %670 = sbr.rel (%p668) target = $region56
        $region55: #{rcbam_forward.1} parent=47 // pred_region
          _
        $region56: #{rcbam_forward.1} parent=47 // pred_fallthru
          _
        // Predicated region
        $region57: #{rcbam_forward.1} parent=47 // pred_check
          %p671 = pneg %p228
        $region58: #{rcbam_forward.1} parent=47 // pred_check_branch
          %673 = sbr.rel (%p671) target = $region60
        $region59: #{rcbam_forward.1} parent=47 // pred_region
          _
        $region60: #{rcbam_forward.1} parent=47 // pred_fallthru
          _
        // Predicated region
        $region61: #{rcbam_forward.1} parent=47 // pred_check
          %p674 = pneg %p254
        $region62: #{rcbam_forward.1} parent=47 // pred_check_branch
          %676 = sbr.rel (%p674) target = $region64
        $region63: #{rcbam_forward.1} parent=47 // pred_region
          _
        $region64: #{rcbam_forward.1} parent=47 // pred_fallthru
          _
      $region48: #{rcbam_forward.1} parent=5 // pred_fallthru
        _
      %p677 = scmp.le.s32.totalorder 2, %s17
      // Predicated region
      $region65: #{rcbam_forward.1} parent=5 // pred_check
        %p678 = pneg %p677
      $region66: #{rcbam_forward.1} parent=5 // pred_check_branch
        %680 = sbr.rel (%p678) target = $region68
      $region67: #{rcbam_forward.1} parent=5 // pred_region
        %s681 = ssub.s32 %s17, 2
        // Predicated region
        $region69: #{rcbam_forward.1} parent=67 // pred_check
          %p682 = pneg %p208
        $region70: #{rcbam_forward.1} parent=67 // pred_check_branch
          %684 = sbr.rel (%p682) target = $region72
        $region71: #{rcbam_forward.1} parent=67 // pred_region
          %p685 = scmp.lt.s32.totalorder %s23, 1
          %s686 = scalar_select %p685, %s23, 1
          %s687 = smul.addr %s686, 2
          %s688 = smul.addr %s687, 8
          %s689 = scalar_lea.vmem %s7, %s688
        $region72: #{rcbam_forward.1} parent=67 // pred_fallthru
          _
        // Predicated region
        $region73: #{rcbam_forward.1} parent=67 // pred_check
          %p690 = pneg %p234
        $region74: #{rcbam_forward.1} parent=67 // pred_check_branch
          %692 = sbr.rel (%p690) target = $region76
        $region75: #{rcbam_forward.1} parent=67 // pred_region
          %p693 = scmp.lt.s32.totalorder %s23, 1
          %s694 = scalar_select %p693, %s23, 1
          %s695 = smul.addr %s694, 2
          %s696 = smul.addr %s695, 8
          %s697 = scalar_lea.vmem %s8, %s696
        $region76: #{rcbam_forward.1} parent=67 // pred_fallthru
          _
        // Predicated region
        $region77: #{rcbam_forward.1} parent=67 // pred_check
          %p698 = pneg %p260
        $region78: #{rcbam_forward.1} parent=67 // pred_check_branch
          %700 = sbr.rel (%p698) target = $region80
        $region79: #{rcbam_forward.1} parent=67 // pred_region
          %p701 = scmp.lt.s32.totalorder %s23, 1
          %s702 = scalar_select %p701, %s23, 1
          %s703 = scalar_lea.vmem %s9, %s702
        $region80: #{rcbam_forward.1} parent=67 // pred_fallthru
          _
      $region68: #{rcbam_forward.1} parent=5 // pred_fallthru
        _
    $region6: #{rcbam_forward.1} parent=1 // loop_footer
      %s21 = sadd.s32 1, %s17
    $region7: #{rcbam_forward.1} parent=1 // loop_footer_branch
      %16 = sbr.rel target = $region3
    $region8: #{rcbam_forward.1} parent=1 // loop_exit
      _
    %704 = vsyncpa [#allocation3], 1
    %s705 = scalar_lea.sflag [#allocation3], 1
    %706 = vsyncpa %s705, 1

</llo_original>
